<compile_context>
chip_gen: v6e
topology: v6e:2x2x1
jax: 0.10.0
libtpu: 0.0.40
codegen_flags: <defaults>
</compile_context>

<pallas_src>
import functools

import numpy as np
import jax
import jax.numpy as jnp
from jax.experimental import pallas as pl
from jax.experimental.pallas import tpu as pltpu


def _round_up(x, m):
    return ((x + m - 1) // m) * m


def _vmem_limit(est_bytes):
    # explicit scoped-VMEM budget (v5e default 16 MiB is too small for the
    # whole-map-resident convs at realistic resolutions)
    return int(min(100 << 20, max(32 << 20, 2 * int(est_bytes))))


def _pick_th(oh, row_bytes, *, need8=False, budget=(2 << 20)):
    """Largest row-tile height that divides OH and fits the VMEM budget."""
    cands = sorted({t for t in (oh, 64, 32, 16, 8, 4, 2, 1)
                    if 0 < t <= oh and oh % t == 0}, reverse=True)
    if need8:
        c8 = [t for t in cands if t % 8 == 0 or t == oh]
        cands = c8 or cands
    for t in cands:
        if t * row_bytes <= budget:
            return t
    return cands[-1]


# --------------------------- input masking / concat -------------------------

def _mask_concat_kernel(img_ref, edge_ref, mask_ref, out_ref):
    m = mask_ref[...]
    out_ref[:, 0, :] = (img_ref[...] * (1.0 - m) + m).astype(out_ref.dtype)
    out_ref[:, 1, :] = (edge_ref[...] * (1.0 - m)).astype(out_ref.dtype)
    out_ref[:, 2, :] = m.astype(out_ref.dtype)


def mask_concat(images, edges, masks):
    """cat((images*(1-m)+m, edges*(1-m), m), channel) -> (B, H, W, 3) bf16."""
    B, _, H, W = images.shape
    HW = H * W
    flat = lambda a: a.reshape(B, HW).astype(jnp.float32)
    spec = pl.BlockSpec((B, HW), lambda i: (0, 0))
    out = pl.pallas_call(
        _mask_concat_kernel,
        out_shape=jax.ShapeDtypeStruct((B, 3, HW), jnp.bfloat16),
        grid=(1,),
        in_specs=[spec, spec, spec],
        out_specs=pl.BlockSpec((B, 3, HW), lambda i: (0, 0, 0)),
    )(flat(images), flat(edges), flat(masks))
    return out.transpose(0, 2, 1).reshape(B, H, W, 3)


# --------------------------- tiled MXU matmul (+bias) ------------------------

def _matmul_kernel(a_ref, w_ref, b_ref, o_ref, acc_ref, *, act):
    @pl.when(pl.program_id(2) == 0)
    def _init():
        acc_ref[...] = jnp.zeros_like(acc_ref)

    acc_ref[...] += jnp.dot(a_ref[...], w_ref[...],
                            preferred_element_type=jnp.float32)

    @pl.when(pl.program_id(2) == pl.num_programs(2) - 1)
    def _done():
        y = acc_ref[...] + b_ref[...]
        if act == "sigmoid":
            y = jax.nn.sigmoid(y)
        o_ref[...] = y.astype(o_ref.dtype)


def matmul_bias(a, w, bias, act="none", out_dtype=jnp.bfloat16):
    """(M,K)@(K,N)+bias; bf16 operands, f32 accumulation.  K is kept as a
    single un-padded full-dim block when small (avoids the K=147 pad copy)."""
    M, K = a.shape
    N = w.shape[1]
    if K <= 1024:
        tk, Kp = K, K
    elif K % 512 == 0:
        tk, Kp = 512, K
    else:
        tk, Kp = 512, _round_up(K, 512)
    tn = N if N <= 512 else (256 if N % 256 == 0 else 128)
    Np = _round_up(N, tn)
    tm = next((t for t in (2048, 1024, 512, 256, 128, 64, 32, 16, 8)
               if t <= M and M % t == 0), None)
    if tm is None:
        tm = min(1024, _round_up(M, 8))
    Mp = _round_up(M, tm)

    a = a.astype(jnp.bfloat16)
    w = w.astype(jnp.bfloat16)
    if (Mp, Kp) != (M, K):
        a = jnp.pad(a, ((0, Mp - M), (0, Kp - K)))
    if (Kp, Np) != (K, N):
        w = jnp.pad(w, ((0, Kp - K), (0, Np - N)))
    b = jnp.pad(bias.astype(jnp.float32), (0, Np - N)).reshape(1, Np)

    grid = (Mp // tm, Np // tn, Kp // tk)
    out = pl.pallas_call(
        functools.partial(_matmul_kernel, act=act),
        out_shape=jax.ShapeDtypeStruct((Mp, Np), out_dtype),
        grid=grid,
        in_specs=[pl.BlockSpec((tm, tk), lambda i, j, k: (i, k)),
                  pl.BlockSpec((tk, tn), lambda i, j, k: (k, j)),
                  pl.BlockSpec((1, tn), lambda i, j, k: (0, j))],
        out_specs=pl.BlockSpec((tm, tn), lambda i, j, k: (i, j)),
        scratch_shapes=[pltpu.VMEM((tm, tn), jnp.float32)],
        compiler_params=pltpu.CompilerParams(
            dimension_semantics=("parallel", "parallel", "arbitrary")),
        cost_estimate=pl.CostEstimate(
            flops=int(2 * Mp * Np * Kp), transcendentals=0,
            bytes_accessed=int(2 * (Mp * Kp + Kp * Np + Mp * Np))),
    )(a, w, b)
    if (Mp, Np) != (M, N):
        out = out[:M, :N]
    return out


# --------------------------- direct (im2col-free) stride-1 conv --------------

def _direct_conv_kernel(x_ref, w_ref, b_ref, o_ref, *, kh, kw, dil, th, ow, owp,
                        act, single_out):
    # x_ref: (1, Hp, Wpe, C) whole padded map of one batch item (DMA'd once per
    # batch item); w_ref: (KH*KW, C, OCp); b_ref: (1, OCp).
    row0 = pl.program_id(1) * th
    c = x_ref.shape[-1]
    ocp = w_ref.shape[-1]
    acc = jnp.zeros((th * owp, ocp), jnp.float32)
    for ki in range(kh):
        slab = x_ref[0, pl.ds(row0 + ki * dil, th), :, :]          # (th, Wpe, C)
        for kj in range(kw):
            a = slab[:, kj * dil:kj * dil + owp, :].reshape(th * owp, c)
            acc = acc + jnp.dot(a, w_ref[ki * kw + kj, :, :],
                                preferred_element_type=jnp.float32)
    if single_out:
        # padded weight channels are zero, so the lane-sum equals channel 0
        v = jnp.sum(acc.reshape(th, owp, ocp), axis=-1) + b_ref[0, 0]
        if act == "sigmoid":
            v = jax.nn.sigmoid(v)
        o_ref[0, :, :] = v[:, :ow].astype(o_ref.dtype)
    else:
        y = acc + b_ref[...]
        if act == "sigmoid":
            y = jax.nn.sigmoid(y)
        o_ref[0, :, :, :] = y.reshape(th, owp, ocp)[:, :ow, :].astype(o_ref.dtype)


def conv2d_direct(x_pad, w, b, *, dilation=1, act="none", single_out=False,
                  out_dtype=jnp.bfloat16):
    """Stride-1 conv on an already-padded NHWC input, no patch materialization.
    One tall (th*OW, C)@(C, OC) MXU matmul per kernel tap.
    single_out=True: OC == 1, output stored lane-dense as (B, OH, OW)."""
    OC, IC, KH, KW = w.shape
    B, Hp, Wp, C = x_pad.shape
    OH = Hp - dilation * (KH - 1)
    OW = Wp - dilation * (KW - 1)
    OWp = _round_up(OW, 8)
    if OWp != OW:   # keep in-kernel reshapes sublane-aligned (only at toy sizes)
        x_pad = jnp.pad(x_pad, ((0, 0), (0, 0), (0, OWp - OW), (0, 0)))
    Wpe = Wp + (OWp - OW)
    OCp = 128 if single_out else OC

    w_t = jnp.transpose(w, (2, 3, 1, 0)).reshape(KH * KW, IC, OC)
    if OCp != OC:
        w_t = jnp.pad(w_t, ((0, 0), (0, 0), (0, OCp - OC)))
    w_t = w_t.astype(jnp.bfloat16)
    bias = b if b is not None else jnp.zeros((OC,), jnp.float32)
    bias = jnp.pad(bias.astype(jnp.float32), (0, OCp - OC)).reshape(1, OCp)

    row_bytes = OWp * OCp * 4 + Wpe * C * 2
    th = _pick_th(OH, row_bytes, need8=single_out)
    grid = (B, OH // th)

    if single_out:
        out_shape = jax.ShapeDtypeStruct((B, OH, OW), out_dtype)
        out_spec = pl.BlockSpec((1, th, OW), lambda bi, ti: (bi, ti, 0))
        out_blk = th * OW * 4
    else:
        out_shape = jax.ShapeDtypeStruct((B, OH, OW, OC), out_dtype)
        out_spec = pl.BlockSpec((1, th, OW, OC), lambda bi, ti: (bi, ti, 0, 0))
        out_blk = th * OW * OC * 2

    est = 2 * Hp * Wpe * C * 2 + w_t.size * 2 + 2 * out_blk \
        + th * OWp * OCp * 4 + th * Wpe * C * 2
    # TODO(synk): on v7x (64 MiB VMEM) switch to row-band (KH-1)-halo tiling of
    # the input for resolutions above ~384x384; fp8 operands for the resblock
    # convs are a further v7x-only option.
    out = pl.pallas_call(
        functools.partial(_direct_conv_kernel, kh=KH, kw=KW, dil=dilation,
                          th=th, ow=OW, owp=OWp, act=act, single_out=single_out),
        out_shape=out_shape,
        grid=grid,
        in_specs=[pl.BlockSpec((1, Hp, Wpe, C), lambda bi, ti: (bi, 0, 0, 0)),
                  pl.BlockSpec(w_t.shape, lambda bi, ti: (0, 0, 0)),
                  pl.BlockSpec((1, OCp), lambda bi, ti: (0, 0))],
        out_specs=out_spec,
        compiler_params=pltpu.CompilerParams(
            dimension_semantics=("parallel", "parallel"),
            vmem_limit_bytes=_vmem_limit(est)),
        cost_estimate=pl.CostEstimate(
            flops=int(2 * B * OH * OW * OCp * IC * KH * KW), transcendentals=0,
            bytes_accessed=int(2 * (B * Hp * Wpe * C + w_t.size + B * OH * OW * OCp))),
    )(x_pad.astype(jnp.bfloat16), w_t, bias)
    return out


# --------------------------- direct 4x4 stride-2 conv (enc2/enc3) ------------

def _conv_s2_kernel(x_ref, w_ref, b_ref, o_ref, *, kh, th, ow, owp):
    # x_ref: (1, Hg, 2, Wg, 2C) paired view of the zero-padded map.
    row0 = pl.program_id(1) * th
    c2 = x_ref.shape[-1]                 # 2*C
    oc = w_ref.shape[-1]
    acc = jnp.zeros((th * owp, oc), jnp.float32)
    for ki in range(kh):
        rows = x_ref[0, pl.ds(row0 + ki // 2, th), ki % 2, :, :]   # (th, Wg, 2C)
        # fold the 4 KW taps into the contraction dim: K = 4*IC
        lhs = jnp.concatenate([rows[:, 0:owp, :], rows[:, 1:owp + 1, :]], axis=-1)
        acc = acc + jnp.dot(lhs.reshape(th * owp, 2 * c2), w_ref[ki, :, :],
                            preferred_element_type=jnp.float32)
    y = acc + b_ref[...]
    o_ref[0, :, :, :] = y.reshape(th, owp, oc)[:, :ow, :].astype(o_ref.dtype)


def conv2d_stride2(x, w, b, out_dtype=jnp.bfloat16):
    """PyTorch Conv2d(kernel=4, stride=2, padding=1) on NHWC input, im2col-free."""
    OC, IC, KH, KW = w.shape
    B, H, W_, C = x.shape
    assert C == IC and KH == 4 and KW == 4 and H % 2 == 0 and W_ % 2 == 0
    OH, OW = H // 2, W_ // 2
    OWp = _round_up(OW, 8)
    pad_r = 1 + 2 * (OWp - OW)
    xp = jnp.pad(x.astype(jnp.bfloat16), ((0, 0), (1, 1), (1, pad_r), (0, 0)))
    Hg = (H + 2) // 2
    Wg = (W_ + 1 + pad_r) // 2          # = OWp + 1
    xg = xp.reshape(B, Hg, 2, Wg, 2 * C)               # free (bit-cast) reshape
    w_t = jnp.transpose(w, (2, 3, 1, 0)).reshape(KH, KW * IC, OC).astype(jnp.bfloat16)
    bias = (b if b is not None else jnp.zeros((OC,), jnp.float32))
    bias = bias.astype(jnp.float32).reshape(1, OC)

    row_bytes = OWp * (OC * 4 + KW * IC * 2) + Wg * 2 * C * 2
    th = _pick_th(OH, row_bytes)
    grid = (B, OH // th)
    est = 2 * Hg * 2 * Wg * 2 * C * 2 + w_t.size * 2 + 2 * th * OW * OC * 2 \
        + th * OWp * OC * 4 + th * OWp * KW * IC * 2
    out = pl.pallas_call(
        functools.partial(_conv_s2_kernel, kh=KH, th=th, ow=OW, owp=OWp),
        out_shape=jax.ShapeDtypeStruct((B, OH, OW, OC), out_dtype),
        grid=grid,
        in_specs=[pl.BlockSpec((1, Hg, 2, Wg, 2 * C),
                               lambda bi, ti: (bi, 0, 0, 0, 0)),
                  pl.BlockSpec((KH, KW * IC, OC), lambda bi, ti: (0, 0, 0)),
                  pl.BlockSpec((1, OC), lambda bi, ti: (0, 0))],
        out_specs=pl.BlockSpec((1, th, OW, OC), lambda bi, ti: (bi, ti, 0, 0)),
        compiler_params=pltpu.CompilerParams(
            dimension_semantics=("parallel", "parallel"),
            vmem_limit_bytes=_vmem_limit(est)),
        cost_estimate=pl.CostEstimate(
            flops=int(2 * B * OH * OW * OC * IC * KH * KW), transcendentals=0,
            bytes_accessed=int(2 * (B * H * W_ * C + w_t.size + B * OH * OW * OC))),
    )(xg, w_t, bias)
    return out


# --------------------------- fused ConvTranspose2d(4, s2, p1) ----------------

def _deconv_kernel(x_ref, w_ref, b_ref, o_ref, *, th, wp, w_out):
    # x_ref: (1, H+2, WP+2, IC) zero-padded map; w_ref: (8, 2*IC, OC).
    row0 = pl.program_id(1) * th
    ic = x_ref.shape[-1]
    oc = w_ref.shape[-1]
    slabs = [x_ref[0, pl.ds(row0 + t, th), :, :] for t in range(3)]
    # fold the two column taps of each phase into K = 2*IC
    lhs = [[jnp.concatenate([s[:, pc:pc + wp, :], s[:, pc + 1:pc + 1 + wp, :]],
                            axis=-1).reshape(th * wp, 2 * ic)
            for pc in range(2)] for s in slabs]
    for pc in range(2):
        rows_pr = []
        for pr in range(2):
            acc = jnp.zeros((th * wp, oc), jnp.float32)
            for a in range(2):
                acc = acc + jnp.dot(lhs[pr + a][pc],
                                    w_ref[(pr * 2 + pc) * 2 + a, :, :],
                                    preferred_element_type=jnp.float32)
            rows_pr.append((acc + b_ref[...]).reshape(th, wp, oc))
        # interleave even/odd output rows (free leading-dim merge)
        half = jnp.stack(rows_pr, axis=1).reshape(2 * th, wp, oc)
        # the two column phases sit side-by-side on the channel axis; the
        # wrapper's free reshape (W, 2*OC) -> (2W, OC) realizes the interleave
        o_ref[0, :, :, pc * oc:(pc + 1) * oc] = half[:, :w_out, :].astype(o_ref.dtype)


def conv_transpose2d(x, w, b, out_dtype=jnp.bfloat16):
    """PyTorch ConvTranspose2d(kernel=4, stride=2, padding=1) on NHWC input via
    a single fused phase-decomposed kernel (no zero-stuffing, no XLA interleave)."""
    IC, OC, KH, KW = w.shape
    B, H, W_, C = x.shape
    assert C == IC and KH == 4 and KW == 4
    WP = _round_up(W_, 8)
    xp = jnp.pad(x.astype(jnp.bfloat16), ((0, 0), (1, 1), (1, 1 + WP - W_), (0, 0)))
    Hp, Wpe = H + 2, WP + 2

    # phase tap table derived from i = 2*m - 1 + k  (verified vs lax reference)
    sel = ((3, 1), (2, 0))
    w_oi = jnp.transpose(w, (1, 0, 2, 3))             # (OC, IC, KH, KW)
    mats = []
    for pr in range(2):
        for pc in range(2):
            for a in range(2):
                taps = [w_oi[:, :, sel[pr][a], sel[pc][bc]].T for bc in range(2)]
                mats.append(jnp.concatenate(taps, axis=0))       # (2*IC, OC)
    w_t = jnp.stack(mats).astype(jnp.bfloat16)                   # (8, 2*IC, OC)
    bias = (b if b is not None else jnp.zeros((OC,), jnp.float32))
    bias = bias.astype(jnp.float32).reshape(1, OC)

    row_bytes = WP * (4 * OC * 4 + 6 * 2 * IC * 2) + Wpe * IC * 2
    th = _pick_th(H, row_bytes, budget=(4 << 20))
    grid = (B, H // th)
    est = 2 * Hp * Wpe * IC * 2 + w_t.size * 2 + 2 * (2 * th) * W_ * 2 * OC * 2 \
        + 4 * th * WP * OC * 4 + 6 * th * WP * 2 * IC * 2
    out = pl.pallas_call(
        functools.partial(_deconv_kernel, th=th, wp=WP, w_out=W_),
        out_shape=jax.ShapeDtypeStruct((B, 2 * H, W_, 2 * OC), out_dtype),
        grid=grid,
        in_specs=[pl.BlockSpec((1, Hp, Wpe, IC), lambda bi, ti: (bi, 0, 0, 0)),
                  pl.BlockSpec((8, 2 * IC, OC), lambda bi, ti: (0, 0, 0)),
                  pl.BlockSpec((1, OC), lambda bi, ti: (0, 0))],
        out_specs=pl.BlockSpec((1, 2 * th, W_, 2 * OC),
                               lambda bi, ti: (bi, ti, 0, 0)),
        compiler_params=pltpu.CompilerParams(
            dimension_semantics=("parallel", "parallel"),
            vmem_limit_bytes=_vmem_limit(est)),
        cost_estimate=pl.CostEstimate(
            flops=int(2 * B * H * W_ * 4 * OC * IC * 4), transcendentals=0,
            bytes_accessed=int(2 * (B * Hp * Wpe * IC + w_t.size + B * 4 * H * W_ * OC))),
    )(xp, w_t, bias)
    # free (bit-cast) reshape: channel phases -> interleaved columns
    return out.reshape(B, 2 * H, 2 * W_, OC)


# --------------------------- instance norm (+relu / +residual) ---------------

def _inorm_kernel(x_ref, o_ref, *, relu):
    # per-(sample, channel) normalization, eps=1e-5, biased variance, no affine
    x = x_ref[...].astype(jnp.float32)            # (1, HW, cb)
    inv_n = 1.0 / x.shape[1]
    s1 = jnp.sum(x, axis=1, keepdims=True)
    s2 = jnp.sum(x * x, axis=1, keepdims=True)
    mean = s1 * inv_n
    var = jnp.maximum(s2 * inv_n - mean * mean, 0.0)
    y = (x - mean) * jax.lax.rsqrt(var + 1e-5)
    if relu:
        y = jnp.maximum(y, 0.0)
    o_ref[...] = y.astype(o_ref.dtype)


def _inorm_add_kernel(x_ref, res_ref, o_ref):
    # instance-norm with the ResnetBlock residual add fused in: o = res + norm(x)
    x = x_ref[...].astype(jnp.float32)
    inv_n = 1.0 / x.shape[1]
    s1 = jnp.sum(x, axis=1, keepdims=True)
    s2 = jnp.sum(x * x, axis=1, keepdims=True)
    mean = s1 * inv_n
    var = jnp.maximum(s2 * inv_n - mean * mean, 0.0)
    y = (x - mean) * jax.lax.rsqrt(var + 1e-5)
    o_ref[...] = (res_ref[...].astype(jnp.float32) + y).astype(o_ref.dtype)


def instance_norm(x, relu, residual=None):
    """InstanceNorm2d(affine=False) [+ReLU | +residual] on NHWC, bf16 output."""
    B, H, W_, C = x.shape
    HW = H * W_
    cb = 128 if C % 128 == 0 else C
    # TODO(synk): for very large H*W (v7x 64 MiB VMEM) switch to a two-pass
    # HW-tiled scheme (per-tile sum/sumsq accumulation, then normalize pass).
    spec = pl.BlockSpec((1, HW, cb), lambda b, c: (b, 0, c))
    blk = HW * cb
    if residual is None:
        kernel = functools.partial(_inorm_kernel, relu=relu)
        operands = (x.reshape(B, HW, C),)
        in_specs = [spec]
        est = 4 * blk * 2 + 3 * blk * 4
    else:
        kernel = _inorm_add_kernel
        operands = (x.reshape(B, HW, C), residual.reshape(B, HW, C))
        in_specs = [spec, spec]
        est = 6 * blk * 2 + 3 * blk * 4
    y = pl.pallas_call(
        kernel,
        out_shape=jax.ShapeDtypeStruct((B, HW, C), jnp.bfloat16),
        grid=(B, C // cb),
        in_specs=in_specs,
        out_specs=spec,
        compiler_params=pltpu.CompilerParams(
            dimension_semantics=("parallel", "parallel"),
            vmem_limit_bytes=_vmem_limit(est)),
    )(*operands)
    return y.reshape(B, H, W_, C)


# --------------------------- conv glue (plain JAX) ---------------------------

def reflect_pad(x, p):
    return jnp.pad(x, ((0, 0), (p, p), (p, p), (0, 0)), mode="reflect")


def zero_pad(x, p):
    return jnp.pad(x, ((0, 0), (p, p), (p, p), (0, 0)))


def _im2col_nhwc(x, kh, kw, stride, dilation):
    B, Hp, Wp, C = x.shape
    oh = (Hp - dilation * (kh - 1) - 1) // stride + 1
    ow = (Wp - dilation * (kw - 1) - 1) // stride + 1
    cols = []
    for ki in range(kh):
        for kj in range(kw):
            cols.append(
                x[:, ki * dilation:ki * dilation + (oh - 1) * stride + 1:stride,
                  kj * dilation:kj * dilation + (ow - 1) * stride + 1:stride, :])
    p = jnp.stack(cols, axis=3)                     # (B, OH, OW, KH*KW, C)
    return p.reshape(B * oh * ow, kh * kw * C), oh, ow


def conv2d_gemm(x_pad, w, b, stride=1, dilation=1, act="none"):
    """Conv via im2col + tiled MXU matmul (only enc1, where IC=3)."""
    OC, IC, KH, KW = w.shape
    B = x_pad.shape[0]
    patches, oh, ow = _im2col_nhwc(x_pad, KH, KW, stride, dilation)
    wm = jnp.transpose(w, (2, 3, 1, 0)).reshape(KH * KW * IC, OC)
    bias = b if b is not None else jnp.zeros((OC,), jnp.float32)
    y = matmul_bias(patches, wm, bias, act=act)
    return y.reshape(B, oh, ow, OC)


# --------------------------- parameter init ----------------------------------

def _spectral_normalize(w, dim=0):
    # Inference-time spectral norm: divide by the exact largest singular value.
    # (PyTorch uses its stored power-iteration u/v estimate — intentional approx.)
    if dim == 0:
        mat = w.reshape(w.shape[0], -1)
    else:
        perm = (dim,) + tuple(i for i in range(w.ndim) if i != dim)
        mat = np.transpose(w, perm).reshape(w.shape[dim], -1)
    sigma = np.linalg.norm(mat, 2)
    return w / (sigma + 1e-12)


def init_edge_generator_params(seed=0, residual_blocks=8):
    rng = np.random.RandomState(seed)

    def conv_p(oc, ic, kh, kw, bias=True, sn=True):
        w = rng.normal(0.0, 0.02, (oc, ic, kh, kw)).astype(np.float32)
        if sn:
            w = _spectral_normalize(w, dim=0)
        b = np.zeros((oc,), np.float32) if bias else None
        return {"w": jnp.asarray(w), "b": None if b is None else jnp.asarray(b)}

    def deconv_p(ic, oc, kh, kw):
        w = rng.normal(0.0, 0.02, (ic, oc, kh, kw)).astype(np.float32)
        w = _spectral_normalize(w, dim=1)
        return {"w": jnp.asarray(w), "b": jnp.asarray(np.zeros((oc,), np.float32))}

    return {
        "enc1": conv_p(64, 3, 7, 7),
        "enc2": conv_p(128, 64, 4, 4),
        "enc3": conv_p(256, 128, 4, 4),
        "blocks": [
            {"c1": conv_p(256, 256, 3, 3, bias=False),
             "c2": conv_p(256, 256, 3, 3, bias=False)}
            for _ in range(residual_blocks)
        ],
        "dec1": deconv_p(256, 128, 4, 4),
        "dec2": deconv_p(128, 64, 4, 4),
        "dec3": conv_p(1, 64, 7, 7, bias=True, sn=False),
    }


# --------------------------- model forward -----------------------------------

def edge_generator_forward(params, x):
    # encoder
    x = conv2d_gemm(reflect_pad(x, 3), params["enc1"]["w"], params["enc1"]["b"])
    x = instance_norm(x, relu=True)
    x = conv2d_stride2(x, params["enc2"]["w"], params["enc2"]["b"])
    x = instance_norm(x, relu=True)
    x = conv2d_stride2(x, params["enc3"]["w"], params["enc3"]["b"])
    x = instance_norm(x, relu=True)

    # middle: 8 x ResnetBlock(256, dilation=2), scanned so kernels compile once
    c1w = jnp.stack([blk["c1"]["w"] for blk in params["blocks"]])
    c2w = jnp.stack([blk["c2"]["w"] for blk in params["blocks"]])

    def resblock(h, ws):
        w1, w2 = ws
        y = conv2d_direct(reflect_pad(h, 2), w1, None, dilation=2)
        y = instance_norm(y, relu=True)
        y = conv2d_direct(reflect_pad(y, 1), w2, None, dilation=1)
        h = instance_norm(y, relu=False, residual=h)     # fused residual add
        return h, None

    x, _ = jax.lax.scan(resblock, x, (c1w, c2w))

    # decoder: fused phase-decomposed deconvs + lane-dense 1-channel final conv
    x = conv_transpose2d(x, params["dec1"]["w"], params["dec1"]["b"])
    x = instance_norm(x, relu=True)
    x = conv_transpose2d(x, params["dec2"]["w"], params["dec2"]["b"])
    x = instance_norm(x, relu=True)
    x = conv2d_direct(reflect_pad(x, 3), params["dec3"]["w"], params["dec3"]["b"],
                      dilation=1, act="sigmoid", single_out=True,
                      out_dtype=jnp.float32)              # (B, H, W) f32
    return x[..., None]                                   # (B, H, W, 1)


def edge_model_forward(params, images, edges, masks):
    # EdgeModel.forward: mask, concat, run generator.  Inputs NCHW (B,1,H,W).
    inputs = mask_concat(images, edges, masks)            # (B, H, W, 3) bf16
    out = edge_generator_forward(params, inputs)          # (B, H, W, 1) f32
    return jnp.transpose(out, (0, 3, 1, 2))               # -> NCHW (B, 1, H, W)


# TODO(synk): discriminator, adversarial/FM losses and Adam optimizers live in
# EdgeModel.process()/backward(), not forward(); intentionally out of scope.


# --------------------------- references for numeric checks -------------------

def _conv_ref(x_pad, w_oihw, b, stride=1, dilation=1):
    w_hwio = jnp.transpose(w_oihw, (2, 3, 1, 0))
    y = jax.lax.conv_general_dilated(
        x_pad.astype(jnp.float32), w_hwio.astype(jnp.float32),
        (stride, stride), "VALID", rhs_dilation=(dilation, dilation),
        dimension_numbers=("NHWC", "HWIO", "NHWC"))
    if b is not None:
        y = y + b
    return y


def _deconv_ref(x, w_icohw, b):
    w_hwio = jnp.transpose(w_icohw[:, :, ::-1, ::-1], (2, 3, 0, 1))
    y = jax.lax.conv_general_dilated(
        x.astype(jnp.float32), w_hwio.astype(jnp.float32), (1, 1),
        ((2, 2), (2, 2)), lhs_dilation=(2, 2),
        dimension_numbers=("NHWC", "HWIO", "NHWC"))
    return y + b


def _inorm_ref(x, relu, residual=None):
    x = x.astype(jnp.float32)
    mean = jnp.mean(x, axis=(1, 2), keepdims=True)
    var = jnp.mean(jnp.square(x - mean), axis=(1, 2), keepdims=True)
    y = (x - mean) * jax.lax.rsqrt(var + 1e-5)
    if residual is not None:
        y = residual.astype(jnp.float32) + y
    if relu:
        y = jnp.maximum(y, 0.0)
    return y


def _check(name, got, want, tol=0.03):
    got = np.asarray(jnp.asarray(got, dtype=jnp.float32))
    want = np.asarray(jnp.asarray(want, dtype=jnp.float32))
    assert got.shape == want.shape, f"{name}: shape {got.shape} vs {want.shape}"
    err = float(np.max(np.abs(got - want)))
    ref = max(float(np.max(np.abs(want))), 1e-3)
    assert err <= tol * ref, f"{name}: max err {err:.4g} vs scale {ref:.4g}"


# --------------------------- main ---------------------------------------------

if __name__ == "__main__":
    B, H, W = 2, 16, 16
    key = jax.random.PRNGKey(0)
    k1, k2, k3 = jax.random.split(key, 3)
    images = jax.random.uniform(k1, (B, 1, H, W), dtype=jnp.float32)
    edges = (jax.random.uniform(k2, (B, 1, H, W)) > 0.5).astype(jnp.float32)
    masks = (jax.random.uniform(k3, (B, 1, H, W)) > 0.5).astype(jnp.float32)

    # --- numeric equivalence checks against XLA references (small shapes) ----
    ks = jax.random.split(jax.random.PRNGKey(1), 12)

    inp = mask_concat(images, edges, masks)
    m = masks.astype(jnp.float32)
    want = jnp.concatenate([images * (1 - m) + m, edges * (1 - m), m], axis=1)
    _check("mask_concat", jnp.transpose(inp, (0, 3, 1, 2)), want)

    a = jax.random.normal(ks[0], (64, 147), jnp.float32) * 0.1
    wm = jax.random.normal(ks[1], (147, 64), jnp.float32) * 0.1
    bm = jax.random.normal(ks[2], (64,), jnp.float32) * 0.1
    _check("matmul_bias", matmul_bias(a, wm, bm), a @ wm + bm)

    xt = jax.random.normal(ks[3], (2, 8, 8, 32), jnp.float32)
    wt = jax.random.normal(ks[4], (32, 32, 3, 3), jnp.float32) * 0.1
    xp_ = reflect_pad(xt, 2)
    _check("conv_direct_dil2", conv2d_direct(xp_, wt, None, dilation=2),
           _conv_ref(xp_, wt, None, dilation=2))

    xt = jax.random.normal(ks[5], (2, 8, 8, 64), jnp.float32)
    wt = jax.random.normal(ks[6], (1, 64, 7, 7), jnp.float32) * 0.1
    bt = jax.random.normal(ks[7], (1,), jnp.float32)
    xp_ = reflect_pad(xt, 3)
    _check("conv_direct_7x7_oc1",
           conv2d_direct(xp_, wt, bt, act="none", single_out=True,
                         out_dtype=jnp.float32),
           _conv_ref(xp_, wt, bt)[..., 0])

    xt = jax.random.normal(ks[8], (2, 8, 8, 64), jnp.float32)
    wt = jax.random.normal(ks[9], (128, 64, 4, 4), jnp.float32) * 0.1
    bt = jax.random.normal(ks[10], (128,), jnp.float32) * 0.1
    _check("conv_stride2", conv2d_stride2(xt, wt, bt),
           _conv_ref(zero_pad(xt, 1), wt, bt, stride=2))

    xt = jax.random.normal(ks[11], (2, 4, 4, 128), jnp.float32)
    wt = jax.random.normal(ks[0], (128, 64, 4, 4), jnp.float32) * 0.1
    bt = jax.random.normal(ks[1], (64,), jnp.float32) * 0.1
    _check("conv_transpose", conv_transpose2d(xt, wt, bt), _deconv_ref(xt, wt, bt))

    xn = (jax.random.normal(ks[2], (2, 8, 8, 64), jnp.float32) * 3 + 1
          ).astype(jnp.bfloat16)
    rn = jax.random.normal(ks[3], (2, 8, 8, 64), jnp.float32).astype(jnp.bfloat16)
    _check("instance_norm_relu", instance_norm(xn, relu=True),
           _inorm_ref(xn, relu=True))
    _check("instance_norm_res", instance_norm(xn, relu=False, residual=rn),
           _inorm_ref(xn, relu=False, residual=rn))

    # --- full EdgeModel.forward ------------------------------------------------
    params = init_edge_generator_params(seed=0, residual_blocks=8)
    fwd = jax.jit(functools.partial(edge_model_forward, params))
    out = jax.block_until_ready(fwd(images, edges, masks))

    assert out.shape == (B, 1, H, W), out.shape
    assert bool(jnp.all(jnp.isfinite(out)))
    assert bool(jnp.all((out >= 0.0) & (out <= 1.0)))     # sigmoid output range
    print("KERNEL_OK")
</pallas_src>

<mosaic_0001>
module attributes {stable_mosaic.version = 11 : i64} {
  func.func @_mask_concat_kernel(%arg0: i32, %arg1: memref<2x256xf32, #tpu.memory_space<vmem>>, %arg2: memref<2x256xf32, #tpu.memory_space<vmem>>, %arg3: memref<2x256xf32, #tpu.memory_space<vmem>>, %arg4: memref<2x3x256xbf16, #tpu.memory_space<vmem>>) attributes {dimension_semantics = [#tpu.dimension_semantics<arbitrary>], iteration_bounds = array<i64: 1>, scalar_prefetch = 0 : i64, scratch_operands = 0 : i64, tpu.core_type = #tpu.core_type<tc>, window_params = [{pipeline_mode = #tpu.pipeline_mode<synchronous>, transform_indices = @transform_0, window_bounds = array<i64: 2, 256>}, {pipeline_mode = #tpu.pipeline_mode<synchronous>, transform_indices = @transform_1, window_bounds = array<i64: 2, 256>}, {pipeline_mode = #tpu.pipeline_mode<synchronous>, transform_indices = @transform_2, window_bounds = array<i64: 2, 256>}, {pipeline_mode = #tpu.pipeline_mode<synchronous>, transform_indices = @transform_3, window_bounds = array<i64: 2, 3, 256>}]} {
    %c0 = arith.constant 0 : index
    %c0_0 = arith.constant 0 : index
    %0 = vector.load %arg3[%c0, %c0_0] : memref<2x256xf32, #tpu.memory_space<vmem>>, vector<2x256xf32>
    %c0_1 = arith.constant 0 : index
    %c0_2 = arith.constant 0 : index
    %1 = vector.load %arg1[%c0_1, %c0_2] : memref<2x256xf32, #tpu.memory_space<vmem>>, vector<2x256xf32>
    %cst = arith.constant 1.000000e+00 : f32
    %2 = vector.broadcast %cst : f32 to vector<2x256xf32>
    %3 = arith.subf %2, %0 : vector<2x256xf32>
    %4 = arith.mulf %1, %3 : vector<2x256xf32>
    %5 = arith.addf %4, %0 : vector<2x256xf32>
    %6 = arith.truncf %5 : vector<2x256xf32> to vector<2x256xbf16>
    %c0_3 = arith.constant 0 : index
    %c0_4 = arith.constant 0 : index
    %c0_5 = arith.constant 0 : index
    %7 = vector.load %arg4[%c0_3, %c0_4, %c0_5] : memref<2x3x256xbf16, #tpu.memory_space<vmem>>, vector<2x1x256xbf16>
    %8 = vector.shape_cast %7 : vector<2x1x256xbf16> to vector<2x256xbf16>
    %9 = vector.shape_cast %6 : vector<2x256xbf16> to vector<2x1x256xbf16>
    tpu.vector_store %arg4[%c0_3, %c0_4, %c0_5], %9 {strides = array<i32>} : memref<2x3x256xbf16, #tpu.memory_space<vmem>>, vector<2x1x256xbf16>,
    %c0_6 = arith.constant 0 : index
    %c0_7 = arith.constant 0 : index
    %10 = vector.load %arg2[%c0_6, %c0_7] : memref<2x256xf32, #tpu.memory_space<vmem>>, vector<2x256xf32>
    %cst_8 = arith.constant 1.000000e+00 : f32
    %11 = vector.broadcast %cst_8 : f32 to vector<2x256xf32>
    %12 = arith.subf %11, %0 : vector<2x256xf32>
    %13 = arith.mulf %10, %12 : vector<2x256xf32>
    %14 = arith.truncf %13 : vector<2x256xf32> to vector<2x256xbf16>
    %c0_9 = arith.constant 0 : index
    %c1 = arith.constant 1 : index
    %c0_10 = arith.constant 0 : index
    %15 = vector.load %arg4[%c0_9, %c1, %c0_10] : memref<2x3x256xbf16, #tpu.memory_space<vmem>>, vector<2x1x256xbf16>
    %16 = vector.shape_cast %15 : vector<2x1x256xbf16> to vector<2x256xbf16>
    %17 = vector.shape_cast %14 : vector<2x256xbf16> to vector<2x1x256xbf16>
    tpu.vector_store %arg4[%c0_9, %c1, %c0_10], %17 {strides = array<i32>} : memref<2x3x256xbf16, #tpu.memory_space<vmem>>, vector<2x1x256xbf16>,
    %18 = arith.truncf %0 : vector<2x256xf32> to vector<2x256xbf16>
    %c0_11 = arith.constant 0 : index
    %c2 = arith.constant 2 : index
    %c0_12 = arith.constant 0 : index
    %19 = vector.load %arg4[%c0_11, %c2, %c0_12] : memref<2x3x256xbf16, #tpu.memory_space<vmem>>, vector<2x1x256xbf16>
    %20 = vector.shape_cast %19 : vector<2x1x256xbf16> to vector<2x256xbf16>
    %21 = vector.shape_cast %18 : vector<2x256xbf16> to vector<2x1x256xbf16>
    tpu.vector_store %arg4[%c0_11, %c2, %c0_12], %21 {strides = array<i32>} : memref<2x3x256xbf16, #tpu.memory_space<vmem>>, vector<2x1x256xbf16>,
    return
  }
  func.func @transform_0(%arg0: i32) -> (i32, i32) {
    %c0_i32 = arith.constant 0 : i32
    %c0_i32_0 = arith.constant 0 : i32
    %c0_i32_1 = arith.constant 0 : i32
    return %c0_i32, %c0_i32_0 : i32, i32
  }
  func.func @transform_1(%arg0: i32) -> (i32, i32) {
    %c0_i32 = arith.constant 0 : i32
    %c0_i32_0 = arith.constant 0 : i32
    %c0_i32_1 = arith.constant 0 : i32
    return %c0_i32, %c0_i32_0 : i32, i32
  }
  func.func @transform_2(%arg0: i32) -> (i32, i32) {
    %c0_i32 = arith.constant 0 : i32
    %c0_i32_0 = arith.constant 0 : i32
    %c0_i32_1 = arith.constant 0 : i32
    return %c0_i32, %c0_i32_0 : i32, i32
  }
  func.func @transform_3(%arg0: i32) -> (i32, i32, i32) {
    %c0_i32 = arith.constant 0 : i32
    %c0_i32_0 = arith.constant 0 : i32
    %c0_i32_1 = arith.constant 0 : i32
    %c0_i32_2 = arith.constant 0 : i32
    return %c0_i32, %c0_i32_0, %c0_i32_1 : i32, i32, i32
  }
}

</mosaic_0001>

<llo_original>
// kernel: tpu_custom_call.1
$region0: #{tpu_custom_call.1}
  #allocation0 [shape = 'u32[]', space=smem, size = 0x4, offset = 0x4, fixed_abs, tag = 'smem constant byte address 0x4 - core index']
  #allocation1 [shape = 'u32[144,128]{1,0:T(1,128)}', space=vmem, size = 0x12000, scoped, tag = 'internal scratch']
  %s0 = inlined_call_operand.hbm [shape: f32[2,256], index: 0, kind: input, shape index: {}]
  %s1 = inlined_call_operand.hbm [shape: f32[2,256], index: 1, kind: input, shape index: {}]
  %s2 = inlined_call_operand.hbm [shape: f32[2,256], index: 2, kind: input, shape index: {}]
  %s3 = inlined_call_operand.vmem [shape: bf16[2,3,256], index: 3, kind: output, shape index: {}]
  %s4 = sld [smem:[#allocation0]]
  $region34: #{tpu_custom_call.1} parent=0
    _
  %s6 = ssub.s32 1, %s4
  %s7 = scalar_select 0, %s6, %s4
  $region1: #{tpu_custom_call.1} parent=0
    #allocation2 [shape = 'u8[2048]{0}', space=vmem, size = 0x800, scoped, tag = 'input window, operand 0, single buffered']
    #allocation3 [shape = 's32[1]{0}', space=sflag, size = 0x4, scoped, tag = 'scoped memory for tpu_custom_call.1']
    #allocation4 [shape = 'u8[2048]{0}', space=vmem, size = 0x800, scoped, tag = 'input window, operand 1, single buffered']
    #allocation5 [shape = 's32[1]{0}', space=sflag, size = 0x4, scoped, tag = 'scoped memory for tpu_custom_call.1']
    #allocation6 [shape = 'u8[2048]{0}', space=vmem, size = 0x800, scoped, tag = 'input window, operand 2, single buffered']
    %8 = vsyncpa [#allocation3], 0
    %9 = vsyncpa [#allocation5], 0
    // Predicated region
    $region2: #{tpu_custom_call.1} parent=1 // pred_check
      _
    $region3: #{tpu_custom_call.1} parent=1 // pred_check_branch
      %11 = sbr.rel (0) target = $region5
    $region4: #{tpu_custom_call.1} parent=1 // pred_region
      %s13 = ssub.s32 64, 64
      %14 = vsyncadd [#allocation3], %s13
      %s16 = sshll.u32 [#allocation2], 4
      %s17 = int_to_ptr.vmem [resolvable:$true] %s16
      %19 = dma.hbm_to_vmem [thread:$0]  %s0, 64, %s17, [#allocation3]
    $region5: #{tpu_custom_call.1} parent=1 // pred_fallthru
      _
    // Predicated region
    $region6: #{tpu_custom_call.1} parent=1 // pred_check
      _
    $region7: #{tpu_custom_call.1} parent=1 // pred_check_branch
      %21 = sbr.rel (0) target = $region9
    $region8: #{tpu_custom_call.1} parent=1 // pred_region
      %s23 = ssub.s32 64, 64
      %24 = vsyncadd [#allocation5], %s23
      %s26 = sshll.u32 [#allocation4], 4
      %s27 = int_to_ptr.vmem [resolvable:$true] %s26
      %29 = dma.hbm_to_vmem [thread:$0]  %s1, 64, %s27, [#allocation5]
    $region9: #{tpu_custom_call.1} parent=1 // pred_fallthru
      _
    // Predicated region
    $region10: #{tpu_custom_call.1} parent=1 // pred_check
      _
    $region11: #{tpu_custom_call.1} parent=1 // pred_check_branch
      %31 = sbr.rel (0) target = $region13
    $region12: #{tpu_custom_call.1} parent=1 // pred_region
      %s33 = ssub.s32 64, 64
      %34 = vsyncadd [#allocation5], %s33
      %s36 = sshll.u32 [#allocation6], 4
      %s37 = int_to_ptr.vmem [resolvable:$true] %s36
      %39 = dma.hbm_to_vmem [thread:$0]  %s2, 64, %s37, [#allocation5]
    $region13: #{tpu_custom_call.1} parent=1 // pred_fallthru
      _
    // Predicated region
    $region14: #{tpu_custom_call.1} parent=1 // pred_check
      _
    $region15: #{tpu_custom_call.1} parent=1 // pred_check_branch
      %41 = sbr.rel (0) target = $region17
    $region16: #{tpu_custom_call.1} parent=1 // pred_region
      %42 = dma.done [#allocation3], 64
    $region17: #{tpu_custom_call.1} parent=1 // pred_fallthru
      _
    // Predicated region
    $region18: #{tpu_custom_call.1} parent=1 // pred_check
      _
    $region19: #{tpu_custom_call.1} parent=1 // pred_check_branch
      %44 = sbr.rel (0) target = $region21
    $region20: #{tpu_custom_call.1} parent=1 // pred_region
      %45 = dma.done [#allocation5], 64
    $region21: #{tpu_custom_call.1} parent=1 // pred_fallthru
      _
    // Predicated region
    $region22: #{tpu_custom_call.1} parent=1 // pred_check
      _
    $region23: #{tpu_custom_call.1} parent=1 // pred_check_branch
      %47 = sbr.rel (0) target = $region25
    $region24: #{tpu_custom_call.1} parent=1 // pred_region
      %48 = dma.done [#allocation5], 64
    $region25: #{tpu_custom_call.1} parent=1 // pred_fallthru
      _
    %v49 = vld [vmem:[#allocation6] sm:$0xf]
    %v50 = vld [vmem:[#allocation2] sm:$0xf]
    %v51 = vsub.f32 1.0, %v49
    %v52 = vmul.f32 %v50, %v51
    %v53 = vadd.f32 %v52, %v49
    %v56 = vunpack.c.l.s4 1983009808
    %v57 = vunpack.c.0.s8 %v56
    %v58 = vlaneseq
    %v59 = vshrl.u32 %v58, 7
    %v60 = vsub.s32 %v57, %v59
    %v61 = vrot.slane %v53, %v60
    %v62 = vcombine.high %v61, %v61
    %v65 = vpack.c.bf16 %v61, %v61
    %v66 = vpack.c.bf16 %v62, %v62
    %v69 = vcombine.low %v65, %v66
    %v71 = vunpack.c.l.s4 1966171168
    %v72 = vunpack.c.0.s8 %v71
    %v73 = vlaneseq
    %v74 = vshrl.u32 %v73, 7
    %v75 = vsub.s32 %v72, %v74
    %v76 = vrot.slane %v69, %v75
    %v78 = vunpack.c.l.s4 1966171168
    %v79 = vunpack.c.0.s8 %v78
    %v80 = vlaneseq
    %v81 = vshrl.u32 %v80, 7
    %v82 = vsub.s32 %v79, %v81
    %v83 = vrot.slane %v76, %v82
    %v84 = vunpack.i.l.s16 %v83
    %v85 = vunpack.i.h.s16 %v83
    %v86 = vpack.i.b16 %v84, %v84
    %v87 = vpack.i.b16 %v85, %v85
    %v89 = vunpack.c.l.s4 857870592
    %v90 = vunpack.c.0.s8 %v89
    %v91 = vlaneseq
    %v92 = vshrl.u32 %v91, 7
    %v93 = vsub.s32 %v90, %v92
    %v94 = vrot.slane %v86, %v93
    %v96 = vunpack.c.l.s4 857870592
    %v97 = vunpack.c.0.s8 %v96
    %v98 = vlaneseq
    %v99 = vshrl.u32 %v98, 7
    %v100 = vsub.s32 %v97, %v99
    %v101 = vrot.slane %v87, %v100
    %vm104 = vcmask 1040384
    %vm105 = vsmask.f32 256
    %vm106 = vmand %vm104, %vm105
    %vm107 = vcmask 1042434
    %vm108 = vsmask.f32 2304
    %vm109 = vmand %vm107, %vm108
    %vm110 = vmor %vm109, %vm106
    %v111 = vld [vmem:[%s3] sm:$0x5]
    %v112 = vsel %vm110, %v94, %v111
    %113 = vst [vmem:[%s3] sm:$0x5] %v112
    %v114 = vld [vmem:[%s3 + $0x4] sm:$0x5]
    %v115 = vsel %vm110, %v101, %v114
    %116 = vst [vmem:[%s3 + $0x4] sm:$0x5] %v115
    %v117 = vld [vmem:[#allocation4] sm:$0xf]
    %v118 = vmul.f32 %v117, %v51
    %v121 = vunpack.c.l.s4 1983009808
    %v122 = vunpack.c.0.s8 %v121
    %v123 = vlaneseq
    %v124 = vshrl.u32 %v123, 7
    %v125 = vsub.s32 %v122, %v124
    %v126 = vrot.slane %v118, %v125
    %v127 = vcombine.high %v126, %v126
    %v130 = vpack.c.bf16 %v126, %v126
    %v131 = vpack.c.bf16 %v127, %v127
    %v134 = vcombine.low %v130, %v131
    %v136 = vunpack.c.l.s4 1966171168
    %v137 = vunpack.c.0.s8 %v136
    %v138 = vlaneseq
    %v139 = vshrl.u32 %v138, 7
    %v140 = vsub.s32 %v137, %v139
    %v141 = vrot.slane %v134, %v140
    %v143 = vunpack.c.l.s4 1966171168
    %v144 = vunpack.c.0.s8 %v143
    %v145 = vlaneseq
    %v146 = vshrl.u32 %v145, 7
    %v147 = vsub.s32 %v144, %v146
    %v148 = vrot.slane %v141, %v147
    %v149 = vunpack.i.l.s16 %v148
    %v150 = vunpack.i.h.s16 %v148
    %v151 = vpack.i.b16 %v149, %v149
    %v152 = vpack.i.b16 %v150, %v150
    %v154 = vunpack.c.l.s4 857870592
    %v155 = vunpack.c.0.s8 %v154
    %v156 = vlaneseq
    %v157 = vshrl.u32 %v156, 7
    %v158 = vsub.s32 %v155, %v157
    %v159 = vrot.slane %v151, %v158
    %v161 = vunpack.c.l.s4 857870592
    %v162 = vunpack.c.0.s8 %v161
    %v163 = vlaneseq
    %v164 = vshrl.u32 %v163, 7
    %v165 = vsub.s32 %v162, %v164
    %v166 = vrot.slane %v152, %v165
    %vm169 = vsmask.f32 7938
    %vm170 = vmand %vm104, %vm169
    %vm171 = vsmask.f32 7946
    %vm172 = vmand %vm107, %vm171
    %vm173 = vmor %vm172, %vm170
    %v174 = vld [vmem:[%s3] sm:$0x5]
    %v175 = vsel %vm173, %v159, %v174
    %176 = vst [vmem:[%s3] sm:$0x5] %v175
    %v177 = vld [vmem:[%s3 + $0x4] sm:$0x5]
    %v178 = vsel %vm173, %v166, %v177
    %179 = vst [vmem:[%s3 + $0x4] sm:$0x5] %v178
    %v182 = vunpack.c.l.s4 1983009808
    %v183 = vunpack.c.0.s8 %v182
    %v184 = vlaneseq
    %v185 = vshrl.u32 %v184, 7
    %v186 = vsub.s32 %v183, %v185
    %v187 = vrot.slane %v49, %v186
    %v188 = vcombine.high %v187, %v187
    %v191 = vpack.c.bf16 %v187, %v187
    %v192 = vpack.c.bf16 %v188, %v188
    %v195 = vcombine.low %v191, %v192
    %v197 = vunpack.c.l.s4 1966171168
    %v198 = vunpack.c.0.s8 %v197
    %v199 = vlaneseq
    %v200 = vshrl.u32 %v199, 7
    %v201 = vsub.s32 %v198, %v200
    %v202 = vrot.slane %v195, %v201
    %v204 = vunpack.c.l.s4 1966171168
    %v205 = vunpack.c.0.s8 %v204
    %v206 = vlaneseq
    %v207 = vshrl.u32 %v206, 7
    %v208 = vsub.s32 %v205, %v207
    %v209 = vrot.slane %v202, %v208
    %v210 = vunpack.i.l.s16 %v209
    %v211 = vunpack.i.h.s16 %v209
    %v212 = vpack.i.b16 %v210, %v210
    %v213 = vpack.i.b16 %v211, %v211
    %v215 = vunpack.c.l.s4 857870592
    %v216 = vunpack.c.0.s8 %v215
    %v217 = vlaneseq
    %v218 = vshrl.u32 %v217, 7
    %v219 = vsub.s32 %v216, %v218
    %v220 = vrot.slane %v212, %v219
    %v222 = vunpack.c.l.s4 857870592
    %v223 = vunpack.c.0.s8 %v222
    %v224 = vlaneseq
    %v225 = vshrl.u32 %v224, 7
    %v226 = vsub.s32 %v223, %v225
    %v227 = vrot.slane %v213, %v226
    %vm230 = vcmask 1041409
    %vm231 = vsmask.f32 1280
    %vm232 = vmand %vm230, %vm231
    %vm233 = vcmask 1043459
    %vm234 = vsmask.f32 3328
    %vm235 = vmand %vm233, %vm234
    %vm236 = vmor %vm235, %vm232
    %v237 = vld [vmem:[%s3] sm:$0xa]
    %v238 = vsel %vm236, %v220, %v237
    %239 = vst [vmem:[%s3] sm:$0xa] %v238
    %v240 = vld [vmem:[%s3 + $0x4] sm:$0xa]
    %v241 = vsel %vm236, %v227, %v240
    %242 = vst [vmem:[%s3 + $0x4] sm:$0xa] %v241
    // Predicated region
    $region26: #{tpu_custom_call.1} parent=1 // pred_check
      _
    $region27: #{tpu_custom_call.1} parent=1 // pred_check_branch
      %244 = sbr.rel (0) target = $region29
    $region28: #{tpu_custom_call.1} parent=1 // pred_region
      _
    $region29: #{tpu_custom_call.1} parent=1 // pred_fallthru
      _
    // Predicated region
    $region30: #{tpu_custom_call.1} parent=1 // pred_check
      _
    $region31: #{tpu_custom_call.1} parent=1 // pred_check_branch
      %246 = sbr.rel (0) target = $region33
    $region32: #{tpu_custom_call.1} parent=1 // pred_region
      _
    $region33: #{tpu_custom_call.1} parent=1 // pred_fallthru
      _
    %247 = vsyncpa [#allocation3], 1
    %248 = vsyncpa [#allocation5], 1

</llo_original>
